<compile_context>
chip_gen: v6e
topology: v6e:2x2x1
jax: 0.10.0
libtpu: 0.0.40
codegen_flags: <defaults>
</compile_context>

<pallas_src>
import functools

import jax
import jax.numpy as jnp
from jax.experimental import pallas as pl
from jax.experimental.pallas import tpu as pltpu


def _round_up(x, m):
    return ((x + m - 1) // m) * m


def _mm_gated_attn_kernel(
    x_ref,                     # (tm, 3d)  packed [a | v | l]
    w1_ref, b1_ref,            # (3d, P), (1, P)   -> H1 = [ha | ha | hv | 0]
    w2_ref, b2_ref,            # (3d, P), (1, P)   -> H2 = [hv | hl | hl | 0]
    wgx_ref, wgp_ref, bg_ref,  # (3d, P), (3d, P), (1, P)  -> gates (replicated cols)
    out_ref,                   # (tm, P)
    *, d,
):
    x = x_ref[...]                               # f32 already
    a = x[:, 0 * d:1 * d]
    v = x[:, 1 * d:2 * d]
    l = x[:, 2 * d:3 * d]
    prods = jnp.concatenate([a * v, a * l, v * l], axis=-1)   # (tm, 3d)

    h1 = jnp.tanh(
        jnp.dot(x, w1_ref[...], preferred_element_type=jnp.float32) + b1_ref[...])
    h2 = jnp.tanh(
        jnp.dot(x, w2_ref[...], preferred_element_type=jnp.float32) + b2_ref[...])

    z_pre = (jnp.dot(x, wgx_ref[...], preferred_element_type=jnp.float32)
             + jnp.dot(prods, wgp_ref[...], preferred_element_type=jnp.float32)
             + bg_ref[...])
    z = jax.nn.sigmoid(z_pre)                    # (tm, P), gate values replicated c-wide

    out_ref[...] = (z * h1 + (1.0 - z) * h2).astype(out_ref.dtype)


def _pack_params(p, d, c, P):
    """Repack the 6 Linear layers into 4 lane-padded weight blocks + 3 biases."""
    f32 = jnp.float32
    wa, wv, wl = p["wa"].astype(f32), p["wv"].astype(f32), p["wl"].astype(f32)
    ba, bv, bl = p["ba"].reshape(1, c).astype(f32), p["bv"].reshape(1, c).astype(f32), \
        p["bl"].reshape(1, c).astype(f32)
    wav, wal, wvl = p["wav"].astype(f32), p["wal"].astype(f32), p["wvl"].astype(f32)
    bav = p["bav"].reshape(())[()] if p["bav"].size == 1 else p["bav"].reshape(())[()]
    bal = p["bal"].reshape(())
    bvl = p["bvl"].reshape(())
    bav = p["bav"].reshape(())

    # H1 = [ha | ha | hv | 0]
    W1 = jnp.zeros((3 * d, P), f32)
    W1 = W1.at[0:d, 0:c].set(wa)
    W1 = W1.at[0:d, c:2 * c].set(wa)
    W1 = W1.at[d:2 * d, 2 * c:3 * c].set(wv)
    b1 = jnp.zeros((1, P), f32)
    b1 = b1.at[:, 0:c].set(ba).at[:, c:2 * c].set(ba).at[:, 2 * c:3 * c].set(bv)

    # H2 = [hv | hl | hl | 0]
    W2 = jnp.zeros((3 * d, P), f32)
    W2 = W2.at[d:2 * d, 0:c].set(wv)
    W2 = W2.at[2 * d:3 * d, c:2 * c].set(wl)
    W2 = W2.at[2 * d:3 * d, 2 * c:3 * c].set(wl)
    b2 = jnp.zeros((1, P), f32)
    b2 = b2.at[:, 0:c].set(bv).at[:, c:2 * c].set(bl).at[:, 2 * c:3 * c].set(bl)

    # Gates. PyTorch concat order is [x, y, x*y] for each (3d, 1) gate weight.
    # Wgx acts on x = [a | v | l]; Wgp acts on prods = [a*v | a*l | v*l].
    # Each (d, 1) sub-column is replicated across the c output columns of its slot
    # so Z comes out already broadcast to the candidate width.
    def rep(col):  # (d, 1) -> (d, c)
        return jnp.broadcast_to(col, (d, c))

    Wgx = jnp.zeros((3 * d, P), f32)
    Wgx = Wgx.at[0:d,       0:c].set(rep(wav[0:d]))          # z_av: a-part
    Wgx = Wgx.at[d:2 * d,   0:c].set(rep(wav[d:2 * d]))      # z_av: v-part
    Wgx = Wgx.at[0:d,       c:2 * c].set(rep(wal[0:d]))      # z_al: a-part
    Wgx = Wgx.at[2 * d:3 * d, c:2 * c].set(rep(wal[d:2 * d]))  # z_al: l-part
    Wgx = Wgx.at[d:2 * d,   2 * c:3 * c].set(rep(wvl[0:d]))  # z_vl: v-part
    Wgx = Wgx.at[2 * d:3 * d, 2 * c:3 * c].set(rep(wvl[d:2 * d]))  # z_vl: l-part

    Wgp = jnp.zeros((3 * d, P), f32)
    Wgp = Wgp.at[0:d,       0:c].set(rep(wav[2 * d:3 * d]))        # z_av: (a*v)-part
    Wgp = Wgp.at[d:2 * d,   c:2 * c].set(rep(wal[2 * d:3 * d]))    # z_al: (a*l)-part
    Wgp = Wgp.at[2 * d:3 * d, 2 * c:3 * c].set(rep(wvl[2 * d:3 * d]))  # z_vl: (v*l)-part

    bg = jnp.zeros((1, P), f32)
    bg = bg.at[:, 0:c].set(bav).at[:, c:2 * c].set(bal).at[:, 2 * c:3 * c].set(bvl)

    return W1, b1, W2, b2, Wgx, Wgp, bg


def _default_tm(d, P):
    """VMEM-budgeted row tile, sized against the smallest per-TC VMEM (v7x: 64 MiB)."""
    try:
        phys = int(getattr(pltpu.get_tpu_info(), "vmem_capacity_bytes"))
    except Exception:
        phys = 64 * 1024 * 1024
    budget = phys // 8                       # headroom for weights, scratch, compiler
    per_row = 2 * (3 * d + P) * 4            # double-buffered f32 input + output bytes
    tm = budget // max(per_row, 1)
    tm = max(8, min(2048, (tm // 8) * 8))
    return tm


def mm_gated_attention(a, v, l, params, *, tm=None, interpret=False):
    """Pallas wrapper. a, v, l: (N, mem_dim). Returns (N, 3*cand_dim) float32."""
    n, d = a.shape
    c = params["wa"].shape[1]
    P = _round_up(3 * c, 128)

    # Pack the three modality streams into one lane-dense input (1 DMA stream).
    x = jnp.concatenate(
        [a.astype(jnp.float32), v.astype(jnp.float32), l.astype(jnp.float32)], axis=-1)

    if tm is None:
        tm = _default_tm(d, P)
    tm = int(max(8, min(int(tm), _round_up(n, 8))))
    tm = max(8, (tm // 8) * 8)
    n_pad = _round_up(n, tm)
    if n_pad != n:
        x = jnp.pad(x, ((0, n_pad - n), (0, 0)))

    # NOTE: weight packing is a one-time cost; cache the packed arrays for repeated calls.
    W1, b1, W2, b2, Wgx, Wgp, bg = _pack_params(params, d, c, P)

    row_spec = pl.BlockSpec((tm, 3 * d), lambda i: (i, 0))

    def full(shape):
        return pl.BlockSpec(shape, lambda i: (0, 0))

    # Rough VMEM estimate (double-buffered streams + weights), used to raise the limit.
    est = 2 * tm * (3 * d + P) * 4 + 2 * (4 * (3 * d) * P + 3 * P) * 4
    vmem_limit = int(min(max(4 * est, 32 * 1024 * 1024), 64 * 1024 * 1024))

    out = pl.pallas_call(
        functools.partial(_mm_gated_attn_kernel, d=d),
        out_shape=jax.ShapeDtypeStruct((n_pad, P), jnp.float32),
        grid=(n_pad // tm,),
        in_specs=[
            row_spec,
            full((3 * d, P)), full((1, P)),
            full((3 * d, P)), full((1, P)),
            full((3 * d, P)), full((3 * d, P)), full((1, P)),
        ],
        out_specs=pl.BlockSpec((tm, P), lambda i: (i, 0)),
        compiler_params=pltpu.CompilerParams(
            dimension_semantics=("parallel",),
            vmem_limit_bytes=vmem_limit,
        ),
        interpret=interpret,
    )(x, W1, b1, W2, b2, Wgx, Wgp, bg)

    return out[:n, : 3 * c]


def _reference(a, v, l, p):
    """Pure-JAX reference mirroring the PyTorch forward (eval mode, modals='avl')."""
    ha = jnp.tanh(a @ p["wa"] + p["ba"])
    hv = jnp.tanh(v @ p["wv"] + p["bv"])
    hl = jnp.tanh(l @ p["wl"] + p["bl"])
    z_av = jax.nn.sigmoid(jnp.concatenate([a, v, a * v], -1) @ p["wav"] + p["bav"])
    z_al = jax.nn.sigmoid(jnp.concatenate([a, l, a * l], -1) @ p["wal"] + p["bal"])
    z_vl = jax.nn.sigmoid(jnp.concatenate([v, l, v * l], -1) @ p["wvl"] + p["bvl"])
    h_av = z_av * ha + (1 - z_av) * hv
    h_al = z_al * ha + (1 - z_al) * hl
    h_vl = z_vl * hv + (1 - z_vl) * hl
    return jnp.concatenate([h_av, h_al, h_vl], -1)


def _init_params(key, mem_dim, cand_dim):
    ks = jax.random.split(key, 12)

    def lin(kw, kb, fan_in, fan_out):
        bound = 1.0 / jnp.sqrt(fan_in)
        w = jax.random.uniform(kw, (fan_in, fan_out), jnp.float32, -bound, bound)
        b = jax.random.uniform(kb, (1, fan_out), jnp.float32, -bound, bound)
        return w, b

    wa, ba = lin(ks[0], ks[1], mem_dim, cand_dim)
    wv, bv = lin(ks[2], ks[3], mem_dim, cand_dim)
    wl, bl = lin(ks[4], ks[5], mem_dim, cand_dim)
    wav, bav = lin(ks[6], ks[7], 3 * mem_dim, 1)
    wal, bal = lin(ks[8], ks[9], 3 * mem_dim, 1)
    wvl, bvl = lin(ks[10], ks[11], 3 * mem_dim, 1)
    return dict(wa=wa, ba=ba, wv=wv, bv=bv, wl=wl, bl=bl,
                wav=wav, bav=bav, wal=wal, bal=bal, wvl=wvl, bvl=bvl)


if __name__ == "__main__":
    key = jax.random.PRNGKey(0)
    mem_dim = 32
    cand_dim = 32
    batch, seq = 2, 8
    n = batch * seq  # flattened (batch, seq) -> rows

    k_a, k_v, k_l, k_p = jax.random.split(key, 4)
    a = jax.random.normal(k_a, (n, mem_dim), jnp.float32)
    v = jax.random.normal(k_v, (n, mem_dim), jnp.float32)
    l = jax.random.normal(k_l, (n, mem_dim), jnp.float32)
    params = _init_params(k_p, mem_dim, cand_dim)

    out = mm_gated_attention(a, v, l, params)
    out = jax.block_until_ready(out)

    ref = _reference(a, v, l, params)
    assert out.shape == (n, 3 * cand_dim), out.shape
    assert jnp.allclose(out, ref, atol=1e-5, rtol=1e-5), "mismatch vs reference"
    print("KERNEL_OK")
</pallas_src>

<mosaic_0001>
module attributes {stable_mosaic.version = 11 : i64} {
  func.func @_mm_gated_attn_kernel(%arg0: i32, %arg1: memref<16x96xf32, #tpu.memory_space<vmem>>, %arg2: memref<96x128xf32, #tpu.memory_space<vmem>>, %arg3: memref<1x128xf32, #tpu.memory_space<vmem>>, %arg4: memref<96x128xf32, #tpu.memory_space<vmem>>, %arg5: memref<1x128xf32, #tpu.memory_space<vmem>>, %arg6: memref<96x128xf32, #tpu.memory_space<vmem>>, %arg7: memref<96x128xf32, #tpu.memory_space<vmem>>, %arg8: memref<1x128xf32, #tpu.memory_space<vmem>>, %arg9: memref<16x128xf32, #tpu.memory_space<vmem>>) attributes {dimension_semantics = [#tpu.dimension_semantics<parallel>], iteration_bounds = array<i64: 1>, scalar_prefetch = 0 : i64, scratch_operands = 0 : i64, tpu.core_type = #tpu.core_type<tc>, window_params = [{transform_indices = @transform_0, window_bounds = array<i64: 16, 96>}, {pipeline_mode = #tpu.pipeline_mode<synchronous>, transform_indices = @transform_1, window_bounds = array<i64: 96, 128>}, {pipeline_mode = #tpu.pipeline_mode<synchronous>, transform_indices = @transform_2, window_bounds = array<i64: 1, 128>}, {pipeline_mode = #tpu.pipeline_mode<synchronous>, transform_indices = @transform_3, window_bounds = array<i64: 96, 128>}, {pipeline_mode = #tpu.pipeline_mode<synchronous>, transform_indices = @transform_4, window_bounds = array<i64: 1, 128>}, {pipeline_mode = #tpu.pipeline_mode<synchronous>, transform_indices = @transform_5, window_bounds = array<i64: 96, 128>}, {pipeline_mode = #tpu.pipeline_mode<synchronous>, transform_indices = @transform_6, window_bounds = array<i64: 96, 128>}, {pipeline_mode = #tpu.pipeline_mode<synchronous>, transform_indices = @transform_7, window_bounds = array<i64: 1, 128>}, {transform_indices = @transform_8, window_bounds = array<i64: 16, 128>}]} {
    %c0 = arith.constant 0 : index
    %c0_0 = arith.constant 0 : index
    %0 = vector.load %arg1[%c0, %c0_0] : memref<16x96xf32, #tpu.memory_space<vmem>>, vector<16x96xf32>
    %1 = vector.extract_strided_slice %0 {offsets = [0, 0], sizes = [16, 32], strides = [1, 1]} : vector<16x96xf32> to vector<16x32xf32>
    %2 = vector.extract_strided_slice %0 {offsets = [0, 32], sizes = [16, 32], strides = [1, 1]} : vector<16x96xf32> to vector<16x32xf32>
    %3 = vector.extract_strided_slice %0 {offsets = [0, 64], sizes = [16, 32], strides = [1, 1]} : vector<16x96xf32> to vector<16x32xf32>
    %4 = arith.mulf %1, %2 : vector<16x32xf32>
    %5 = arith.mulf %1, %3 : vector<16x32xf32>
    %6 = arith.mulf %2, %3 : vector<16x32xf32>
    %7 = tpu.concatenate %4, %5, %6 in 1 : vector<16x32xf32>, vector<16x32xf32>, vector<16x32xf32> -> vector<16x96xf32>
    %c0_1 = arith.constant 0 : index
    %c0_2 = arith.constant 0 : index
    %8 = vector.load %arg2[%c0_1, %c0_2] : memref<96x128xf32, #tpu.memory_space<vmem>>, vector<96x128xf32>
    %cst = arith.constant dense<0.000000e+00> : vector<16x128xf32>
    %9 = tpu.matmul %0, %8, %cst {dimension_numbers = #tpu.dot_dimension_numbers<[1], [0], [0], [1], [0, 0, 1, 1], [], []>} : vector<16x96xf32>, vector<96x128xf32>, vector<16x128xf32> -> vector<16x128xf32>
    %c0_3 = arith.constant 0 : index
    %c0_4 = arith.constant 0 : index
    %10 = vector.load %arg3[%c0_3, %c0_4] : memref<1x128xf32, #tpu.memory_space<vmem>>, vector<1x128xf32>
    %11 = vector.broadcast %10 : vector<1x128xf32> to vector<16x128xf32>
    %12 = arith.addf %9, %11 : vector<16x128xf32>
    %13 = math.tanh %12 : vector<16x128xf32>
    %c0_5 = arith.constant 0 : index
    %c0_6 = arith.constant 0 : index
    %14 = vector.load %arg4[%c0_5, %c0_6] : memref<96x128xf32, #tpu.memory_space<vmem>>, vector<96x128xf32>
    %cst_7 = arith.constant dense<0.000000e+00> : vector<16x128xf32>
    %15 = tpu.matmul %0, %14, %cst_7 {dimension_numbers = #tpu.dot_dimension_numbers<[1], [0], [0], [1], [0, 0, 1, 1], [], []>} : vector<16x96xf32>, vector<96x128xf32>, vector<16x128xf32> -> vector<16x128xf32>
    %c0_8 = arith.constant 0 : index
    %c0_9 = arith.constant 0 : index
    %16 = vector.load %arg5[%c0_8, %c0_9] : memref<1x128xf32, #tpu.memory_space<vmem>>, vector<1x128xf32>
    %17 = vector.broadcast %16 : vector<1x128xf32> to vector<16x128xf32>
    %18 = arith.addf %15, %17 : vector<16x128xf32>
    %19 = math.tanh %18 : vector<16x128xf32>
    %c0_10 = arith.constant 0 : index
    %c0_11 = arith.constant 0 : index
    %20 = vector.load %arg6[%c0_10, %c0_11] : memref<96x128xf32, #tpu.memory_space<vmem>>, vector<96x128xf32>
    %cst_12 = arith.constant dense<0.000000e+00> : vector<16x128xf32>
    %21 = tpu.matmul %0, %20, %cst_12 {dimension_numbers = #tpu.dot_dimension_numbers<[1], [0], [0], [1], [0, 0, 1, 1], [], []>} : vector<16x96xf32>, vector<96x128xf32>, vector<16x128xf32> -> vector<16x128xf32>
    %c0_13 = arith.constant 0 : index
    %c0_14 = arith.constant 0 : index
    %22 = vector.load %arg7[%c0_13, %c0_14] : memref<96x128xf32, #tpu.memory_space<vmem>>, vector<96x128xf32>
    %cst_15 = arith.constant dense<0.000000e+00> : vector<16x128xf32>
    %23 = tpu.matmul %7, %22, %cst_15 {dimension_numbers = #tpu.dot_dimension_numbers<[1], [0], [0], [1], [0, 0, 1, 1], [], []>} : vector<16x96xf32>, vector<96x128xf32>, vector<16x128xf32> -> vector<16x128xf32>
    %24 = arith.addf %21, %23 : vector<16x128xf32>
    %c0_16 = arith.constant 0 : index
    %c0_17 = arith.constant 0 : index
    %25 = vector.load %arg8[%c0_16, %c0_17] : memref<1x128xf32, #tpu.memory_space<vmem>>, vector<1x128xf32>
    %26 = vector.broadcast %25 : vector<1x128xf32> to vector<16x128xf32>
    %27 = arith.addf %24, %26 : vector<16x128xf32>
    %28 = arith.negf %27 : vector<16x128xf32>
    %29 = math.exp %28 : vector<16x128xf32>
    %cst_18 = arith.constant 1.000000e+00 : f32
    %30 = vector.broadcast %cst_18 : f32 to vector<16x128xf32>
    %31 = arith.addf %30, %29 : vector<16x128xf32>
    %32 = arith.divf %30, %31 : vector<16x128xf32>
    %33 = arith.mulf %32, %13 : vector<16x128xf32>
    %cst_19 = arith.constant 1.000000e+00 : f32
    %34 = vector.broadcast %cst_19 : f32 to vector<16x128xf32>
    %35 = arith.subf %34, %32 : vector<16x128xf32>
    %36 = arith.mulf %35, %19 : vector<16x128xf32>
    %37 = arith.addf %33, %36 : vector<16x128xf32>
    %c0_20 = arith.constant 0 : index
    %c0_21 = arith.constant 0 : index
    %38 = vector.load %arg9[%c0_20, %c0_21] : memref<16x128xf32, #tpu.memory_space<vmem>>, vector<16x128xf32>
    tpu.vector_store %arg9[%c0_20, %c0_21], %37 {strides = array<i32>} : memref<16x128xf32, #tpu.memory_space<vmem>>, vector<16x128xf32>,
    return
  }
  func.func @transform_0(%arg0: i32) -> (i32, i32) {
    %c0_i32 = arith.constant 0 : i32
    %c0_i32_0 = arith.constant 0 : i32
    return %arg0, %c0_i32 : i32, i32
  }
  func.func @transform_1(%arg0: i32) -> (i32, i32) {
    %c0_i32 = arith.constant 0 : i32
    %c0_i32_0 = arith.constant 0 : i32
    %c0_i32_1 = arith.constant 0 : i32
    return %c0_i32, %c0_i32_0 : i32, i32
  }
  func.func @transform_2(%arg0: i32) -> (i32, i32) {
    %c0_i32 = arith.constant 0 : i32
    %c0_i32_0 = arith.constant 0 : i32
    %c0_i32_1 = arith.constant 0 : i32
    return %c0_i32, %c0_i32_0 : i32, i32
  }
  func.func @transform_3(%arg0: i32) -> (i32, i32) {
    %c0_i32 = arith.constant 0 : i32
    %c0_i32_0 = arith.constant 0 : i32
    %c0_i32_1 = arith.constant 0 : i32
    return %c0_i32, %c0_i32_0 : i32, i32
  }
  func.func @transform_4(%arg0: i32) -> (i32, i32) {
    %c0_i32 = arith.constant 0 : i32
    %c0_i32_0 = arith.constant 0 : i32
    %c0_i32_1 = arith.constant 0 : i32
    return %c0_i32, %c0_i32_0 : i32, i32
  }
  func.func @transform_5(%arg0: i32) -> (i32, i32) {
    %c0_i32 = arith.constant 0 : i32
    %c0_i32_0 = arith.constant 0 : i32
    %c0_i32_1 = arith.constant 0 : i32
    return %c0_i32, %c0_i32_0 : i32, i32
  }
  func.func @transform_6(%arg0: i32) -> (i32, i32) {
    %c0_i32 = arith.constant 0 : i32
    %c0_i32_0 = arith.constant 0 : i32
    %c0_i32_1 = arith.constant 0 : i32
    return %c0_i32, %c0_i32_0 : i32, i32
  }
  func.func @transform_7(%arg0: i32) -> (i32, i32) {
    %c0_i32 = arith.constant 0 : i32
    %c0_i32_0 = arith.constant 0 : i32
    %c0_i32_1 = arith.constant 0 : i32
    return %c0_i32, %c0_i32_0 : i32, i32
  }
  func.func @transform_8(%arg0: i32) -> (i32, i32) {
    %c0_i32 = arith.constant 0 : i32
    %c0_i32_0 = arith.constant 0 : i32
    return %arg0, %c0_i32 : i32, i32
  }
}

</mosaic_0001>

<llo_original>
// kernel: tpu_custom_call.1
$region0: #{tpu_custom_call.1}
  #allocation0 [shape = 'u32[]', space=smem, size = 0x4, offset = 0x4, fixed_abs, tag = 'smem constant byte address 0x4 - core index']
  #allocation1 [shape = 'u32[144,128]{1,0:T(1,128)}', space=vmem, size = 0x12000, scoped, tag = 'internal scratch']
  %s0 = inlined_call_operand.hbm [shape: f32[16,96], index: 0, kind: input, shape index: {}]
  %s1 = inlined_call_operand.hbm [shape: f32[96,128], index: 1, kind: input, shape index: {}]
  %s2 = inlined_call_operand.vmem [shape: f32[1,128], index: 2, kind: input, shape index: {}]
  %s3 = inlined_call_operand.hbm [shape: f32[96,128], index: 3, kind: input, shape index: {}]
  %s4 = inlined_call_operand.vmem [shape: f32[1,128], index: 4, kind: input, shape index: {}]
  %s5 = inlined_call_operand.hbm [shape: f32[96,128], index: 5, kind: input, shape index: {}]
  %s6 = inlined_call_operand.hbm [shape: f32[96,128], index: 6, kind: input, shape index: {}]
  %s7 = inlined_call_operand.vmem [shape: f32[1,128], index: 7, kind: input, shape index: {}]
  %s8 = inlined_call_operand.hbm [shape: f32[16,128], index: 8, kind: output, shape index: {}]
  %s9 = sld [smem:[#allocation0]]
  $region62: #{tpu_custom_call.1} parent=0
    _
  %s11 = ssub.s32 1, %s9
  %s12 = scalar_select 0, %s11, %s9
  $region1: #{tpu_custom_call.1} parent=0
    #allocation2 [shape = 'u8[8192]{0}', space=vmem, size = 0x2000, scoped, tag = 'input window, operand 0, single buffered']
    #allocation3 [shape = 's32[1]{0}', space=sflag, size = 0x4, scoped, tag = 'scoped memory for tpu_custom_call.1']
    #allocation4 [shape = 's32[1]{0}', space=sflag, size = 0x4, scoped, tag = 'scoped memory for tpu_custom_call.1']
    #allocation5 [shape = 'u8[49152]{0}', space=vmem, size = 0xc000, scoped, tag = 'input window, operand 1, single buffered']
    #allocation6 [shape = 's32[1]{0}', space=sflag, size = 0x4, scoped, tag = 'scoped memory for tpu_custom_call.1']
    #allocation7 [shape = 'u8[49152]{0}', space=vmem, size = 0xc000, scoped, tag = 'input window, operand 3, single buffered']
    #allocation8 [shape = 'u8[49152]{0}', space=vmem, size = 0xc000, scoped, tag = 'input window, operand 5, single buffered']
    #allocation9 [shape = 's32[1]{0}', space=sflag, size = 0x4, scoped, tag = 'scoped memory for tpu_custom_call.1']
    #allocation10 [shape = 'u8[49152]{0}', space=vmem, size = 0xc000, scoped, tag = 'input window, operand 6, single buffered']
    #allocation11 [shape = 'u8[8192]{0}', space=vmem, size = 0x2000, scoped, tag = 'output window, operand 0, single buffered']
    %13 = vsyncpa [#allocation3], 0
    %14 = vsyncpa [#allocation6], 0
    %15 = vsyncpa [#allocation9], 0
    %16 = vsyncpa [#allocation4], 0
    // Predicated region
    $region2: #{tpu_custom_call.1} parent=1 // pred_check
      _
    $region3: #{tpu_custom_call.1} parent=1 // pred_check_branch
      %18 = sbr.rel (0) target = $region5
    $region4: #{tpu_custom_call.1} parent=1 // pred_region
      %s20 = ssub.s32 256, 256
      %21 = vsyncadd [#allocation3], %s20
      %s22 = sshll.u32 [#allocation2], 4
      %s23 = int_to_ptr.vmem [resolvable:$true] %s22
      %28 = dma.hbm_to_vmem [thread:$0]  %s0, 256, %s23, [#allocation3], 128, 128, 8
    $region5: #{tpu_custom_call.1} parent=1 // pred_fallthru
      _
    // Predicated region
    $region6: #{tpu_custom_call.1} parent=1 // pred_check
      _
    $region7: #{tpu_custom_call.1} parent=1 // pred_check_branch
      %30 = sbr.rel (0) target = $region9
    $region8: #{tpu_custom_call.1} parent=1 // pred_region
      %s32 = ssub.s32 1536, 1536
      %33 = vsyncadd [#allocation6], %s32
      %s34 = sshll.u32 [#allocation5], 4
      %s35 = int_to_ptr.vmem [resolvable:$true] %s34
      %40 = dma.hbm_to_vmem [thread:$0]  %s1, 1536, %s35, [#allocation6], 128, 128, 8
    $region9: #{tpu_custom_call.1} parent=1 // pred_fallthru
      _
    // Predicated region
    $region10: #{tpu_custom_call.1} parent=1 // pred_check
      _
    $region11: #{tpu_custom_call.1} parent=1 // pred_check_branch
      %42 = sbr.rel (0) target = $region13
    $region12: #{tpu_custom_call.1} parent=1 // pred_region
      _
    $region13: #{tpu_custom_call.1} parent=1 // pred_fallthru
      _
    // Predicated region
    $region14: #{tpu_custom_call.1} parent=1 // pred_check
      _
    $region15: #{tpu_custom_call.1} parent=1 // pred_check_branch
      %44 = sbr.rel (0) target = $region17
    $region16: #{tpu_custom_call.1} parent=1 // pred_region
      %s46 = ssub.s32 1536, 1536
      %47 = vsyncadd [#allocation6], %s46
      %s48 = sshll.u32 [#allocation7], 4
      %s49 = int_to_ptr.vmem [resolvable:$true] %s48
      %54 = dma.hbm_to_vmem [thread:$0]  %s3, 1536, %s49, [#allocation6], 128, 128, 8
    $region17: #{tpu_custom_call.1} parent=1 // pred_fallthru
      _
    // Predicated region
    $region18: #{tpu_custom_call.1} parent=1 // pred_check
      _
    $region19: #{tpu_custom_call.1} parent=1 // pred_check_branch
      %56 = sbr.rel (0) target = $region21
    $region20: #{tpu_custom_call.1} parent=1 // pred_region
      _
    $region21: #{tpu_custom_call.1} parent=1 // pred_fallthru
      _
    // Predicated region
    $region22: #{tpu_custom_call.1} parent=1 // pred_check
      _
    $region23: #{tpu_custom_call.1} parent=1 // pred_check_branch
      %58 = sbr.rel (0) target = $region25
    $region24: #{tpu_custom_call.1} parent=1 // pred_region
      %s60 = ssub.s32 1536, 1536
      %61 = vsyncadd [#allocation9], %s60
      %s62 = sshll.u32 [#allocation8], 4
      %s63 = int_to_ptr.vmem [resolvable:$true] %s62
      %68 = dma.hbm_to_vmem [thread:$0]  %s5, 1536, %s63, [#allocation9], 128, 128, 8
    $region25: #{tpu_custom_call.1} parent=1 // pred_fallthru
      _
    // Predicated region
    $region26: #{tpu_custom_call.1} parent=1 // pred_check
      _
    $region27: #{tpu_custom_call.1} parent=1 // pred_check_branch
      %70 = sbr.rel (0) target = $region29
    $region28: #{tpu_custom_call.1} parent=1 // pred_region
      %s72 = ssub.s32 1536, 1536
      %73 = vsyncadd [#allocation9], %s72
      %s74 = sshll.u32 [#allocation10], 4
      %s75 = int_to_ptr.vmem [resolvable:$true] %s74
      %80 = dma.hbm_to_vmem [thread:$0]  %s6, 1536, %s75, [#allocation9], 128, 128, 8
    $region29: #{tpu_custom_call.1} parent=1 // pred_fallthru
      _
    // Predicated region
    $region30: #{tpu_custom_call.1} parent=1 // pred_check
      _
    $region31: #{tpu_custom_call.1} parent=1 // pred_check_branch
      %82 = sbr.rel (0) target = $region33
    $region32: #{tpu_custom_call.1} parent=1 // pred_region
      _
    $region33: #{tpu_custom_call.1} parent=1 // pred_fallthru
      _
    // Predicated region
    $region34: #{tpu_custom_call.1} parent=1 // pred_check
      _
    $region35: #{tpu_custom_call.1} parent=1 // pred_check_branch
      %84 = sbr.rel (0) target = $region37
    $region36: #{tpu_custom_call.1} parent=1 // pred_region
      %85 = dma.done [#allocation3], 256
    $region37: #{tpu_custom_call.1} parent=1 // pred_fallthru
      _
    // Predicated region
    $region38: #{tpu_custom_call.1} parent=1 // pred_check
      _
    $region39: #{tpu_custom_call.1} parent=1 // pred_check_branch
      %87 = sbr.rel (0) target = $region41
    $region40: #{tpu_custom_call.1} parent=1 // pred_region
      %88 = dma.done [#allocation6], 1536
    $region41: #{tpu_custom_call.1} parent=1 // pred_fallthru
      _
    // Predicated region
    $region42: #{tpu_custom_call.1} parent=1 // pred_check
      _
    $region43: #{tpu_custom_call.1} parent=1 // pred_check_branch
      %90 = sbr.rel (0) target = $region45
    $region44: #{tpu_custom_call.1} parent=1 // pred_region
      %91 = dma.done [#allocation6], 1536
    $region45: #{tpu_custom_call.1} parent=1 // pred_fallthru
      _
    // Predicated region
    $region46: #{tpu_custom_call.1} parent=1 // pred_check
      _
    $region47: #{tpu_custom_call.1} parent=1 // pred_check_branch
      %93 = sbr.rel (0) target = $region49
    $region48: #{tpu_custom_call.1} parent=1 // pred_region
      %94 = dma.done [#allocation9], 1536
    $region49: #{tpu_custom_call.1} parent=1 // pred_fallthru
      _
    // Predicated region
    $region50: #{tpu_custom_call.1} parent=1 // pred_check
      _
    $region51: #{tpu_custom_call.1} parent=1 // pred_check_branch
      %96 = sbr.rel (0) target = $region53
    $region52: #{tpu_custom_call.1} parent=1 // pred_region
      %97 = dma.done [#allocation9], 1536
    $region53: #{tpu_custom_call.1} parent=1 // pred_fallthru
      _
    %v98 = vld [vmem:[#allocation2] sm:$0xff]
    %v99 = vld [vmem:[#allocation2 + $0x8] sm:$0xff]
    %102 = vrot.lane.b32.xlu0 %v98, 96
    %v103 = vpop.permute.xlu0 %102
    %104 = vrot.lane.b32.xlu0 %v99, 96
    %v105 = vpop.permute.xlu0 %104
    %v108 = vmul.f32 %v98, %v103
    %v109 = vmul.f32 %v99, %v105
    %110 = vrot.lane.b32.xlu0 %v98, 64
    %v111 = vpop.permute.xlu0 %110
    %112 = vrot.lane.b32.xlu0 %v99, 64
    %v113 = vpop.permute.xlu0 %112
    %v116 = vmul.f32 %v98, %v111
    %v117 = vmul.f32 %v99, %v113
    %120 = vrot.lane.b32.xlu0 %v116, 32
    %v121 = vpop.permute.xlu0 %120
    %122 = vrot.lane.b32.xlu0 %v117, 32
    %v123 = vpop.permute.xlu0 %122
    %128 = vrot.lane.b32.xlu0 %v108, 32
    %v129 = vpop.permute.xlu0 %128
    %130 = vrot.lane.b32.xlu0 %v109, 32
    %v131 = vpop.permute.xlu0 %130
    %vm134 = vcmask 261120
    %v135 = vsel %vm134, %v108, %v121
    %v136 = vsel %vm134, %v109, %v123
    %vm137 = vcmask 523264
    %v138 = vsel %vm137, %v135, %v129
    %v139 = vsel %vm137, %v136, %v131
    %v140 = vld [vmem:[#allocation5] sm:$0xff]
    %v141 = vld [vmem:[#allocation5 + $0x8] sm:$0xff]
    %v142 = vld [vmem:[#allocation5 + $0x10] sm:$0xff]
    %v143 = vld [vmem:[#allocation5 + $0x18] sm:$0xff]
    %v144 = vld [vmem:[#allocation5 + $0x20] sm:$0xff]
    %v145 = vld [vmem:[#allocation5 + $0x28] sm:$0xff]
    %v146 = vld [vmem:[#allocation5 + $0x30] sm:$0xff]
    %v147 = vld [vmem:[#allocation5 + $0x38] sm:$0xff]
    %v148 = vld [vmem:[#allocation5 + $0x40] sm:$0xff]
    %v149 = vld [vmem:[#allocation5 + $0x48] sm:$0xff]
    %v150 = vld [vmem:[#allocation5 + $0x50] sm:$0xff]
    %v151 = vld [vmem:[#allocation5 + $0x58] sm:$0xff]
    %v152 = vld [vmem:[%s2] sm:$0x1]
    %v154 = vlaneseq
    %v155 = vshrl.u32 %v154, 7
    %v156 = vsub.s32 0, %v155
    %v157 = vrot.slane %v152, %v156
    %vm159 = vcmask 785408
    %v160 = vsel %vm159, %v98, 0
    %v162 = vsel %vm159, %v99, 0
    %164 = vmatprep.subr.mxu0 0.0
    %165 = vmatpush1.msra.mxu0 0.0
    %166 = vmatprep.subr.mxu0 0.0
    %167 = vmatpush1.msra.mxu0 0.0
    %168 = vmatprep.subr.mxu0 0.0
    %169 = vmatpush1.msra.mxu0 0.0
    %170 = vmatprep.subr.mxu0 0.0
    %171 = vmatpush1.msra.mxu0 0.0
    %172 = vmatprep.subr.mxu0 0.0
    %173 = vmatpush1.msra.mxu0 %v151
    %174 = vmatprep.subr.mxu0 0.0
    %175 = vmatpush1.msra.mxu0 %v150
    %176 = vmatprep.subr.mxu0 0.0
    %177 = vmatpush1.msra.mxu0 %v149
    %178 = vmatprep.subr.mxu0 0.0
    %179 = vmatpush1.msra.mxu0 %v148
    %180 = vmatprep.subr.mxu0 0.0
    %181 = vmatpush1.msra.mxu0 %v147
    %182 = vmatprep.subr.mxu0 0.0
    %183 = vmatpush1.msra.mxu0 %v146
    %184 = vmatprep.subr.mxu0 0.0
    %185 = vmatpush1.msra.mxu0 %v145
    %186 = vmatprep.subr.mxu0 0.0
    %187 = vmatpush1.msra.mxu0 %v144
    %188 = vmatprep.subr.mxu0 0.0
    %189 = vmatpush1.msra.mxu0 %v143
    %190 = vmatprep.subr.mxu0 0.0
    %191 = vmatpush1.msra.mxu0 %v142
    %192 = vmatprep.subr.mxu0 0.0
    %193 = vmatpush1.msra.mxu0 %v141
    %194 = vmatprep.subr.mxu0 0.0
    %195 = vmatpush1.msra.mxu0 %v140
    %196 = vmatprep.subr.mxu0 0.0
    %197 = vmatpush2.msra.mxu0 0.0
    %198 = vmatprep.subr.mxu0 0.0
    %199 = vmatpush2.msra.mxu0 0.0
    %200 = vmatprep.subr.mxu0 0.0
    %201 = vmatpush2.msra.mxu0 0.0
    %202 = vmatprep.subr.mxu0 0.0
    %203 = vmatpush2.msra.mxu0 0.0
    %204 = vmatprep.subr.mxu0 0.0
    %205 = vmatpush2.msra.mxu0 0.0
    %206 = vmatprep.subr.mxu0 0.0
    %207 = vmatpush2.msra.mxu0 0.0
    %208 = vmatprep.subr.mxu0 0.0
    %209 = vmatpush2.msra.mxu0 0.0
    %210 = vmatprep.subr.mxu0 0.0
    %211 = vmatpush2.msra.mxu0 0.0
    %212 = vmatprep.subr.mxu0 0.0
    %213 = vmatpush2.msra.mxu0 0.0
    %214 = vmatprep.subr.mxu0 0.0
    %215 = vmatpush2.msra.mxu0 0.0
    %216 = vmatprep.subr.mxu0 0.0
    %217 = vmatpush2.msra.mxu0 0.0
    %218 = vmatprep.subr.mxu0 0.0
    %219 = vmatpush2.msra.mxu0 0.0
    %220 = vmatprep.subr.mxu0 0.0
    %221 = vmatpush2.msra.mxu0 0.0
    %222 = vmatprep.subr.mxu0 0.0
    %223 = vmatpush2.msra.mxu0 0.0
    %224 = vmatprep.subr.mxu0 0.0
    %225 = vmatpush2.msra.mxu0 0.0
    %226 = vmatprep.subr.mxu0 0.0
    %227 = vmatpush2.msra.mxu0 0.0
    %228 = vmatprep.mubr.f32.mxu0 0.0
    %229 = vmatmul.mubr.f32.gmra.mxu0 %v160
    %v230 = vpop.f32.mrf.mxu0
    %v231 = vadd.f32 %v157, %v230
    %v232 = vpop.f32.mrf.mxu0
    %233 = vmatprep.mubr.f32.mxu0 0.0
    %234 = vmatmul.mubr.f32.gmra.mxu0 %v162
    %v235 = vpop.f32.mrf.mxu0
    %v236 = vadd.f32 %v157, %v235
    %v237 = vpop.f32.mrf.mxu0
    %238 = vdwg.mxu0
    %v239 = vtanh.pop %v231
    %v240 = vtanh.pop %v236
    %v241 = vld [vmem:[#allocation7] sm:$0xff]
    %v242 = vld [vmem:[#allocation7 + $0x8] sm:$0xff]
    %v243 = vld [vmem:[#allocation7 + $0x10] sm:$0xff]
    %v244 = vld [vmem:[#allocation7 + $0x18] sm:$0xff]
    %v245 = vld [vmem:[#allocation7 + $0x20] sm:$0xff]
    %v246 = vld [vmem:[#allocation7 + $0x28] sm:$0xff]
    %v247 = vld [vmem:[#allocation7 + $0x30] sm:$0xff]
    %v248 = vld [vmem:[#allocation7 + $0x38] sm:$0xff]
    %v249 = vld [vmem:[#allocation7 + $0x40] sm:$0xff]
    %v250 = vld [vmem:[#allocation7 + $0x48] sm:$0xff]
    %v251 = vld [vmem:[#allocation7 + $0x50] sm:$0xff]
    %v252 = vld [vmem:[#allocation7 + $0x58] sm:$0xff]
    %v253 = vld [vmem:[%s4] sm:$0x1]
    %v255 = vlaneseq
    %v256 = vshrl.u32 %v255, 7
    %v257 = vsub.s32 0, %v256
    %v258 = vrot.slane %v253, %v257
    %260 = vmatprep.subr.mxu0 0.0
    %261 = vmatpush1.msra.mxu0 0.0
    %262 = vmatprep.subr.mxu0 0.0
    %263 = vmatpush1.msra.mxu0 0.0
    %264 = vmatprep.subr.mxu0 0.0
    %265 = vmatpush1.msra.mxu0 0.0
    %266 = vmatprep.subr.mxu0 0.0
    %267 = vmatpush1.msra.mxu0 0.0
    %268 = vmatprep.subr.mxu0 0.0
    %269 = vmatpush1.msra.mxu0 %v252
    %270 = vmatprep.subr.mxu0 0.0
    %271 = vmatpush1.msra.mxu0 %v251
    %272 = vmatprep.subr.mxu0 0.0
    %273 = vmatpush1.msra.mxu0 %v250
    %274 = vmatprep.subr.mxu0 0.0
    %275 = vmatpush1.msra.mxu0 %v249
    %276 = vmatprep.subr.mxu0 0.0
    %277 = vmatpush1.msra.mxu0 %v248
    %278 = vmatprep.subr.mxu0 0.0
    %279 = vmatpush1.msra.mxu0 %v247
    %280 = vmatprep.subr.mxu0 0.0
    %281 = vmatpush1.msra.mxu0 %v246
    %282 = vmatprep.subr.mxu0 0.0
    %283 = vmatpush1.msra.mxu0 %v245
    %284 = vmatprep.subr.mxu0 0.0
    %285 = vmatpush1.msra.mxu0 %v244
    %286 = vmatprep.subr.mxu0 0.0
    %287 = vmatpush1.msra.mxu0 %v243
    %288 = vmatprep.subr.mxu0 0.0
    %289 = vmatpush1.msra.mxu0 %v242
    %290 = vmatprep.subr.mxu0 0.0
    %291 = vmatpush1.msra.mxu0 %v241
    %292 = vmatprep.subr.mxu0 0.0
    %293 = vmatpush2.msra.mxu0 0.0
    %294 = vmatprep.subr.mxu0 0.0
    %295 = vmatpush2.msra.mxu0 0.0
    %296 = vmatprep.subr.mxu0 0.0
    %297 = vmatpush2.msra.mxu0 0.0
    %298 = vmatprep.subr.mxu0 0.0
    %299 = vmatpush2.msra.mxu0 0.0
    %300 = vmatprep.subr.mxu0 0.0
    %301 = vmatpush2.msra.mxu0 0.0
    %302 = vmatprep.subr.mxu0 0.0
    %303 = vmatpush2.msra.mxu0 0.0
    %304 = vmatprep.subr.mxu0 0.0
    %305 = vmatpush2.msra.mxu0 0.0
    %306 = vmatprep.subr.mxu0 0.0
    %307 = vmatpush2.msra.mxu0 0.0
    %308 = vmatprep.subr.mxu0 0.0
    %309 = vmatpush2.msra.mxu0 0.0
    %310 = vmatprep.subr.mxu0 0.0
    %311 = vmatpush2.msra.mxu0 0.0
    %312 = vmatprep.subr.mxu0 0.0
    %313 = vmatpush2.msra.mxu0 0.0
    %314 = vmatprep.subr.mxu0 0.0
    %315 = vmatpush2.msra.mxu0 0.0
    %316 = vmatprep.subr.mxu0 0.0
    %317 = vmatpush2.msra.mxu0 0.0
    %318 = vmatprep.subr.mxu0 0.0
    %319 = vmatpush2.msra.mxu0 0.0
    %320 = vmatprep.subr.mxu0 0.0
    %321 = vmatpush2.msra.mxu0 0.0
    %322 = vmatprep.subr.mxu0 0.0
    %323 = vmatpush2.msra.mxu0 0.0
    %324 = vmatprep.mubr.f32.mxu0 0.0
    %325 = vmatmul.mubr.f32.gmra.mxu0 %v160
    %v326 = vpop.f32.mrf.mxu0
    %v327 = vadd.f32 %v258, %v326
    %v328 = vpop.f32.mrf.mxu0
    %329 = vmatprep.mubr.f32.mxu0 0.0
    %330 = vmatmul.mubr.f32.gmra.mxu0 %v162
    %v331 = vpop.f32.mrf.mxu0
    %v332 = vadd.f32 %v258, %v331
    %v333 = vpop.f32.mrf.mxu0
    %334 = vdwg.mxu0
    %v335 = vtanh.pop %v327
    %v336 = vtanh.pop %v332
    %v337 = vld [vmem:[#allocation8] sm:$0xff]
    %v338 = vld [vmem:[#allocation8 + $0x8] sm:$0xff]
    %v339 = vld [vmem:[#allocation8 + $0x10] sm:$0xff]
    %v340 = vld [vmem:[#allocation8 + $0x18] sm:$0xff]
    %v341 = vld [vmem:[#allocation8 + $0x20] sm:$0xff]
    %v342 = vld [vmem:[#allocation8 + $0x28] sm:$0xff]
    %v343 = vld [vmem:[#allocation8 + $0x30] sm:$0xff]
    %v344 = vld [vmem:[#allocation8 + $0x38] sm:$0xff]
    %v345 = vld [vmem:[#allocation8 + $0x40] sm:$0xff]
    %v346 = vld [vmem:[#allocation8 + $0x48] sm:$0xff]
    %v347 = vld [vmem:[#allocation8 + $0x50] sm:$0xff]
    %v348 = vld [vmem:[#allocation8 + $0x58] sm:$0xff]
    %v349 = vld [vmem:[#allocation10] sm:$0xff]
    %v350 = vld [vmem:[#allocation10 + $0x8] sm:$0xff]
    %v351 = vld [vmem:[#allocation10 + $0x10] sm:$0xff]
    %v352 = vld [vmem:[#allocation10 + $0x18] sm:$0xff]
    %v353 = vld [vmem:[#allocation10 + $0x20] sm:$0xff]
    %v354 = vld [vmem:[#allocation10 + $0x28] sm:$0xff]
    %v355 = vld [vmem:[#allocation10 + $0x30] sm:$0xff]
    %v356 = vld [vmem:[#allocation10 + $0x38] sm:$0xff]
    %v357 = vld [vmem:[#allocation10 + $0x40] sm:$0xff]
    %v358 = vld [vmem:[#allocation10 + $0x48] sm:$0xff]
    %v359 = vld [vmem:[#allocation10 + $0x50] sm:$0xff]
    %v360 = vld [vmem:[#allocation10 + $0x58] sm:$0xff]
    %v362 = vsel %vm159, %v138, 0
    %v365 = vsel %vm159, %v139, 0
    %367 = vmatprep.subr.mxu0 0.0
    %368 = vmatpush1.msra.mxu0 0.0
    %369 = vmatprep.subr.mxu0 0.0
    %370 = vmatpush1.msra.mxu0 0.0
    %371 = vmatprep.subr.mxu0 0.0
    %372 = vmatpush1.msra.mxu0 0.0
    %373 = vmatprep.subr.mxu0 0.0
    %374 = vmatpush1.msra.mxu0 0.0
    %375 = vmatprep.subr.mxu0 0.0
    %376 = vmatpush1.msra.mxu0 %v360
    %377 = vmatprep.subr.mxu0 0.0
    %378 = vmatpush1.msra.mxu0 %v359
    %379 = vmatprep.subr.mxu0 0.0
    %380 = vmatpush1.msra.mxu0 %v358
    %381 = vmatprep.subr.mxu0 0.0
    %382 = vmatpush1.msra.mxu0 %v357
    %383 = vmatprep.subr.mxu0 0.0
    %384 = vmatpush1.msra.mxu0 %v356
    %385 = vmatprep.subr.mxu0 0.0
    %386 = vmatpush1.msra.mxu0 %v355
    %387 = vmatprep.subr.mxu0 0.0
    %388 = vmatpush1.msra.mxu0 %v354
    %389 = vmatprep.subr.mxu0 0.0
    %390 = vmatpush1.msra.mxu0 %v353
    %391 = vmatprep.subr.mxu0 0.0
    %392 = vmatpush1.msra.mxu0 %v352
    %393 = vmatprep.subr.mxu0 0.0
    %394 = vmatpush1.msra.mxu0 %v351
    %395 = vmatprep.subr.mxu0 0.0
    %396 = vmatpush1.msra.mxu0 %v350
    %397 = vmatprep.subr.mxu0 0.0
    %398 = vmatpush1.msra.mxu0 %v349
    %399 = vmatprep.subr.mxu0 0.0
    %400 = vmatpush2.msra.mxu0 0.0
    %401 = vmatprep.subr.mxu0 0.0
    %402 = vmatpush2.msra.mxu0 0.0
    %403 = vmatprep.subr.mxu0 0.0
    %404 = vmatpush2.msra.mxu0 0.0
    %405 = vmatprep.subr.mxu0 0.0
    %406 = vmatpush2.msra.mxu0 0.0
    %407 = vmatprep.subr.mxu0 0.0
    %408 = vmatpush2.msra.mxu0 0.0
    %409 = vmatprep.subr.mxu0 0.0
    %410 = vmatpush2.msra.mxu0 0.0
    %411 = vmatprep.subr.mxu0 0.0
    %412 = vmatpush2.msra.mxu0 0.0
    %413 = vmatprep.subr.mxu0 0.0
    %414 = vmatpush2.msra.mxu0 0.0
    %415 = vmatprep.subr.mxu0 0.0
    %416 = vmatpush2.msra.mxu0 0.0
    %417 = vmatprep.subr.mxu0 0.0
    %418 = vmatpush2.msra.mxu0 0.0
    %419 = vmatprep.subr.mxu0 0.0
    %420 = vmatpush2.msra.mxu0 0.0
    %421 = vmatprep.subr.mxu0 0.0
    %422 = vmatpush2.msra.mxu0 0.0
    %423 = vmatprep.subr.mxu0 0.0
    %424 = vmatpush2.msra.mxu0 0.0
    %425 = vmatprep.subr.mxu0 0.0
    %426 = vmatpush2.msra.mxu0 0.0
    %427 = vmatprep.subr.mxu0 0.0
    %428 = vmatpush2.msra.mxu0 0.0
    %429 = vmatprep.subr.mxu0 0.0
    %430 = vmatpush2.msra.mxu0 0.0
    %431 = vmatprep.mubr.f32.mxu0 0.0
    %432 = vmatmul.mubr.f32.gmra.mxu0 %v362
    %v433 = vpop.f32.mrf.mxu0
    %v434 = vadd.f32 0.0, %v433
    %v435 = vpop.f32.mrf.mxu0
    %436 = vmatprep.mubr.f32.mxu0 0.0
    %437 = vmatmul.mubr.f32.gmra.mxu0 %v365
    %v438 = vpop.f32.mrf.mxu0
    %v439 = vadd.f32 0.0, %v438
    %v440 = vpop.f32.mrf.mxu0
    %441 = vdwg.mxu0
    %442 = vmatprep.subr.mxu0 0.0
    %443 = vmatpush1.msra.mxu0 0.0
    %444 = vmatprep.subr.mxu0 0.0
    %445 = vmatpush1.msra.mxu0 0.0
    %446 = vmatprep.subr.mxu0 0.0
    %447 = vmatpush1.msra.mxu0 0.0
    %448 = vmatprep.subr.mxu0 0.0
    %449 = vmatpush1.msra.mxu0 0.0
    %450 = vmatprep.subr.mxu0 0.0
    %451 = vmatpush1.msra.mxu0 %v348
    %452 = vmatprep.subr.mxu0 0.0
    %453 = vmatpush1.msra.mxu0 %v347
    %454 = vmatprep.subr.mxu0 0.0
    %455 = vmatpush1.msra.mxu0 %v346
    %456 = vmatprep.subr.mxu0 0.0
    %457 = vmatpush1.msra.mxu0 %v345
    %458 = vmatprep.subr.mxu0 0.0
    %459 = vmatpush1.msra.mxu0 %v344
    %460 = vmatprep.subr.mxu0 0.0
    %461 = vmatpush1.msra.mxu0 %v343
    %462 = vmatprep.subr.mxu0 0.0
    %463 = vmatpush1.msra.mxu0 %v342
    %464 = vmatprep.subr.mxu0 0.0
    %465 = vmatpush1.msra.mxu0 %v341
    %466 = vmatprep.subr.mxu0 0.0
    %467 = vmatpush1.msra.mxu0 %v340
    %468 = vmatprep.subr.mxu0 0.0
    %469 = vmatpush1.msra.mxu0 %v339
    %470 = vmatprep.subr.mxu0 0.0
    %471 = vmatpush1.msra.mxu0 %v338
    %472 = vmatprep.subr.mxu0 0.0
    %473 = vmatpush1.msra.mxu0 %v337
    %474 = vmatprep.subr.mxu0 0.0
    %475 = vmatpush2.msra.mxu0 0.0
    %476 = vmatprep.subr.mxu0 0.0
    %477 = vmatpush2.msra.mxu0 0.0
    %478 = vmatprep.subr.mxu0 0.0
    %479 = vmatpush2.msra.mxu0 0.0
    %480 = vmatprep.subr.mxu0 0.0
    %481 = vmatpush2.msra.mxu0 0.0
    %482 = vmatprep.subr.mxu0 0.0
    %483 = vmatpush2.msra.mxu0 0.0
    %484 = vmatprep.subr.mxu0 0.0
    %485 = vmatpush2.msra.mxu0 0.0
    %486 = vmatprep.subr.mxu0 0.0
    %487 = vmatpush2.msra.mxu0 0.0
    %488 = vmatprep.subr.mxu0 0.0
    %489 = vmatpush2.msra.mxu0 0.0
    %490 = vmatprep.subr.mxu0 0.0
    %491 = vmatpush2.msra.mxu0 0.0
    %492 = vmatprep.subr.mxu0 0.0
    %493 = vmatpush2.msra.mxu0 0.0
    %494 = vmatprep.subr.mxu0 0.0
    %495 = vmatpush2.msra.mxu0 0.0
    %496 = vmatprep.subr.mxu0 0.0
    %497 = vmatpush2.msra.mxu0 0.0
    %498 = vmatprep.subr.mxu0 0.0
    %499 = vmatpush2.msra.mxu0 0.0
    %500 = vmatprep.subr.mxu0 0.0
    %501 = vmatpush2.msra.mxu0 0.0
    %502 = vmatprep.subr.mxu0 0.0
    %503 = vmatpush2.msra.mxu0 0.0
    %504 = vmatprep.subr.mxu0 0.0
    %505 = vmatpush2.msra.mxu0 0.0
    %506 = vmatprep.mubr.f32.mxu0 0.0
    %507 = vmatmul.mubr.f32.gmra.mxu0 %v160
    %v508 = vpop.f32.mrf.mxu0
    %v509 = vadd.f32 %v434, %v508
    %v510 = vpop.f32.mrf.mxu0
    %511 = vmatprep.mubr.f32.mxu0 0.0
    %512 = vmatmul.mubr.f32.gmra.mxu0 %v162
    %v513 = vpop.f32.mrf.mxu0
    %v514 = vadd.f32 %v439, %v513
    %v515 = vpop.f32.mrf.mxu0
    %516 = vdwg.mxu0
    %v517 = vld [vmem:[%s7] sm:$0x1]
    %v519 = vlaneseq
    %v520 = vshrl.u32 %v519, 7
    %v521 = vsub.s32 0, %v520
    %v522 = vrot.slane %v517, %v521
    %v524 = vadd.f32 %v509, %v522
    %v525 = vadd.f32 %v514, %v522
    %v526 = vxor.u32 %v524, 2147483648
    %v527 = vxor.u32 %v525, 2147483648
    %v528 = vmul.f32 %v526, 1.442695
    %v529 = vpow.pop %v528
    %v530 = vmul.f32 %v527, 1.442695
    %v531 = vpow.pop %v530
    %v532 = vadd.f32 %v529, 1.0
    %v533 = vadd.f32 %v531, 1.0
    %v534 = vrcp.pop %v532
    %v535 = vmul.f32 1.0, %v534
    %v536 = vrcp.pop %v533
    %v537 = vmul.f32 1.0, %v536
    %v538 = vmul.f32 %v535, %v239
    %v539 = vmul.f32 %v537, %v240
    %v540 = vsub.f32 1.0, %v535
    %v541 = vsub.f32 1.0, %v537
    %v542 = vmul.f32 %v540, %v335
    %v543 = vmul.f32 %v541, %v336
    %v544 = vadd.f32 %v538, %v542
    %v545 = vadd.f32 %v539, %v543
    %546 = vst [vmem:[#allocation11] sm:$0xff] %v544
    %547 = vst [vmem:[#allocation11 + $0x8] sm:$0xff] %v545
    // Predicated region
    $region54: #{tpu_custom_call.1} parent=1 // pred_check
      _
    $region55: #{tpu_custom_call.1} parent=1 // pred_check_branch
      %549 = sbr.rel (0) target = $region57
    $region56: #{tpu_custom_call.1} parent=1 // pred_region
      %s551 = ssub.s32 256, 256
      %552 = vsyncadd [#allocation4], %s551
      %s553 = sshll.u32 [#allocation11], 4
      %s554 = int_to_ptr.vmem [resolvable:$true] %s553
      %559 = dma.vmem_to_hbm [thread:$0]  %s554, 256, %s8, [#allocation4], 128, 128, 8
    $region57: #{tpu_custom_call.1} parent=1 // pred_fallthru
      _
    // Predicated region
    $region58: #{tpu_custom_call.1} parent=1 // pred_check
      _
    $region59: #{tpu_custom_call.1} parent=1 // pred_check_branch
      %561 = sbr.rel (0) target = $region61
    $region60: #{tpu_custom_call.1} parent=1 // pred_region
      %562 = dma.done [#allocation4], 256
    $region61: #{tpu_custom_call.1} parent=1 // pred_fallthru
      _
    %563 = vsyncpa [#allocation3], 1
    %564 = vsyncpa [#allocation6], 1
    %565 = vsyncpa [#allocation9], 1
    %566 = vsyncpa [#allocation4], 1

</llo_original>
